<compile_context>
chip_gen: v6e
topology: v6e:2x2x1
jax: 0.10.0
libtpu: 0.0.40
codegen_flags: <defaults>
</compile_context>

<pallas_src>
import jax
import jax.numpy as jnp
import numpy as np
from jax.experimental import pallas as pl
from jax.experimental.pallas import tpu as pltpu


def _cdiv(a, b):
    return -(-a // b)


def _capsule_conv_kernel(patch_ref, w_ref, b_ref, s_ref, o_ref):
    # patch_ref: (TMp, P*CK)     bf16  packed im2col rows (P original rows / packed row)
    # w_ref:     (P*CK, LANES)   bf16  block-diagonal conv weights
    # b_ref:     (1, LANES)      f32   tiled bias
    # s_ref:     (LANES, LANES)  bf16  atom-sum/broadcast 0/1 mask
    # o_ref:     (TMp, LANES)    bf16
    conv = jnp.dot(patch_ref[...], w_ref[...],
                   preferred_element_type=jnp.float32) + b_ref[...]     # f32 accum

    # squash(layer='conv'): per (spatial position, out_dim slot), sum |.|^2 over
    # the atom axis and broadcast back across atoms -- one MXU matmul.
    # bf16 operands (mask is exact 0/1), f32 accumulation.
    sq = (conv * conv).astype(jnp.bfloat16)
    mag_sq = jnp.dot(sq, s_ref[...], preferred_element_type=jnp.float32)

    # mag_sq/(1+mag_sq) * conv/sqrt(mag_sq)  ==  conv * sqrt(mag_sq) / (1+mag_sq)
    inv = pl.reciprocal(1.0 + mag_sq, approx=True)                      # EUP slot
    o_ref[...] = (conv * jnp.sqrt(mag_sq) * inv).astype(o_ref.dtype)    # bf16 store


def capsule_conv_forward(x, weight, bias, *, out_dim, out_atoms, stride, kernel_size):
    N, C, H, W = x.shape
    K = kernel_size
    OH = (H - K) // stride + 1
    OW = (W - 1) // stride + 1
    OC = out_atoms * out_dim
    M = N * OH * OW
    CK = C * K

    # ---- glue: im2col (pure JAX), row m = n*OH*OW + oh*OW + ow, col = c*K + k ----
    # TODO(synk): fuse this patch gather into the kernel via pl.ANY + manual DMA.
    x_cols = x[:, :, :, ::stride][:, :, :, :OW]                       # (N, C, H, OW)
    rows = [x_cols[:, :, k:k + (OH - 1) * stride + 1:stride, :] for k in range(K)]
    patches = jnp.stack(rows, axis=-1)                                # (N, C, OH, OW, K)
    patches = jnp.transpose(patches, (0, 2, 3, 1, 4)).reshape(M, CK)  # (M, C*K)

    # ---- pad OC so the packed output width is always a multiple of 128 lanes ----
    if OC >= 128:
        OC_pad = _cdiv(OC, 128) * 128          # multiple of 128, P = 1
    else:
        OC_pad = 1
        while OC_pad < OC:
            OC_pad *= 2                        # power of two -> divides 128
    P = max(1, 128 // OC_pad)
    LANES = P * OC_pad                         # 128 when OC_pad < 128, else OC_pad

    # ---- tile selection: big row tiles, even grid (>= 2 steps) for v7x megacore ----
    row_align = 16 * P                         # packed sublanes multiple of 16 (bf16 out)
    TM_CAP = 8192                              # ~1.3 MiB/step incl. double buffers
    steps = max(2, _cdiv(M, TM_CAP))
    steps += steps % 2                         # even grid: balances v7x's two TensorCores
    TM = _cdiv(_cdiv(M, steps), row_align) * row_align
    M_pad = steps * TM
    if M_pad != M:
        patches = jnp.pad(patches, ((0, M_pad - M), (0, 0)))
    TMp = TM // P

    # bf16 matmul inputs (f32 accumulate inside the kernel).
    patches_packed = patches.reshape(M_pad // P, P * CK).astype(jnp.bfloat16)

    # PyTorch conv weight (OC, C, K, 1) -> (CK, OC_pad) -> block-diag (P*CK, LANES).
    w_small = weight.reshape(OC, CK).T.astype(jnp.float32)
    bias_f = bias.astype(jnp.float32)
    if OC_pad != OC:                           # padded channels: zero weight/bias -> conv 0
        w_small = jnp.pad(w_small, ((0, 0), (0, OC_pad - OC)))
        bias_f = jnp.pad(bias_f, (0, OC_pad - OC))
    eye_p = jnp.eye(P, dtype=jnp.float32)
    w_big = jnp.kron(eye_p, w_small).astype(jnp.bfloat16)             # (P*CK, LANES)
    b_big = jnp.tile(bias_f.reshape(1, OC_pad), (1, P))               # (1, LANES) f32

    # Atom-sum/broadcast mask: within each packed block, S[c,c'] = (c%D == c'%D).
    cidx = jnp.arange(OC_pad)
    s_small = (cidx[:, None] % out_dim == cidx[None, :] % out_dim).astype(jnp.float32)
    s_big = jnp.kron(eye_p, s_small).astype(jnp.bfloat16)             # (LANES, LANES)

    out_packed = pl.pallas_call(
        _capsule_conv_kernel,
        out_shape=jax.ShapeDtypeStruct((M_pad // P, LANES), jnp.bfloat16),
        grid_spec=pltpu.PrefetchScalarGridSpec(
            num_scalar_prefetch=0,
            grid=(steps,),
            in_specs=[
                pl.BlockSpec((TMp, P * CK), lambda i: (i, 0)),
                pl.BlockSpec((P * CK, LANES), lambda i: (0, 0)),
                pl.BlockSpec((1, LANES), lambda i: (0, 0)),
                pl.BlockSpec((LANES, LANES), lambda i: (0, 0)),
            ],
            out_specs=pl.BlockSpec((TMp, LANES), lambda i: (i, 0)),
        ),
        compiler_params=pltpu.CompilerParams(
            dimension_semantics=("parallel",),
            vmem_limit_bytes=32 * 1024 * 1024,
        ),
    )(patches_packed, w_big, b_big, s_big)

    # ---- glue: unpack rows, drop padding, reproduce conv.view(N, A, OH*OW*D) ----
    out = out_packed.reshape(M_pad, OC_pad)[:M, :OC]                  # (M, OC) bf16
    out = out.reshape(N, OH, OW, out_atoms, out_dim)
    # Layout transpose done on bf16 data with the f32 upcast folded into the same pass.
    out = jnp.transpose(out, (0, 3, 4, 1, 2)).astype(jnp.float32)     # (N, A, D, OH, OW)
    return out.reshape(N, out_atoms, out_dim * OH * OW)


def reference_forward(x, weight, bias, *, out_dim, out_atoms, stride, kernel_size):
    conv = jax.lax.conv_general_dilated(
        x, weight, window_strides=(stride, stride), padding="VALID",
        dimension_numbers=("NCHW", "OIHW", "NCHW"))
    conv = conv + bias.reshape(1, -1, 1, 1)
    N = conv.shape[0]
    s = conv.reshape(N, out_atoms, -1)
    mag_sq = jnp.sum(s * s, axis=1, keepdims=True)
    mag = jnp.sqrt(mag_sq)
    return mag_sq / (1.0 + mag_sq) * (s / mag)


if __name__ == "__main__":
    def run_case(input_dim, out_dim, out_atoms, stride, kernel_size, key):
        OC = out_atoms * out_dim
        kx, kw, kb = jax.random.split(key, 3)
        x = jax.random.normal(kx, (2, input_dim, 16, 16), dtype=jnp.float32)
        weight = 0.1 * jax.random.normal(
            kw, (OC, input_dim, kernel_size, 1), dtype=jnp.float32)
        bias = 0.1 * jax.random.normal(kb, (OC,), dtype=jnp.float32)

        out = capsule_conv_forward(
            x, weight, bias, out_dim=out_dim, out_atoms=out_atoms,
            stride=stride, kernel_size=kernel_size)
        out = jax.block_until_ready(out)

        ref = reference_forward(
            x, weight, bias, out_dim=out_dim, out_atoms=out_atoms,
            stride=stride, kernel_size=kernel_size)
        ref = jax.block_until_ready(ref)

        assert out.shape == ref.shape, (out.shape, ref.shape)
        np.testing.assert_allclose(np.asarray(out), np.asarray(ref),
                                   rtol=2e-2, atol=2e-2)

    k0, k1 = jax.random.split(jax.random.PRNGKey(0), 2)
    # Module config: input_dim=4, out_dim=4, out_atoms=8, stride=2, K=5 (OC=32).
    run_case(4, 4, 8, 2, 5, k0)
    # Exercise the padded-OC fallback (OC=24 does not divide 128 -> padded to 32).
    run_case(4, 3, 8, 2, 5, k1)
    print("KERNEL_OK")
</pallas_src>

<mosaic_0001>
module attributes {stable_mosaic.version = 11 : i64} {
  func.func @_capsule_conv_kernel(%arg0: i32, %arg1: memref<16x80xbf16, #tpu.memory_space<vmem>>, %arg2: memref<80x128xbf16, #tpu.memory_space<vmem>>, %arg3: memref<1x128xf32, #tpu.memory_space<vmem>>, %arg4: memref<128x128xbf16, #tpu.memory_space<vmem>>, %arg5: memref<16x128xbf16, #tpu.memory_space<vmem>>) attributes {dimension_semantics = [#tpu.dimension_semantics<parallel>], iteration_bounds = array<i64: 2>, scalar_prefetch = 0 : i64, scratch_operands = 0 : i64, tpu.core_type = #tpu.core_type<tc>, window_params = [{transform_indices = @transform_0, window_bounds = array<i64: 16, 80>}, {pipeline_mode = #tpu.pipeline_mode<synchronous>, transform_indices = @transform_1, window_bounds = array<i64: 80, 128>}, {pipeline_mode = #tpu.pipeline_mode<synchronous>, transform_indices = @transform_2, window_bounds = array<i64: 1, 128>}, {pipeline_mode = #tpu.pipeline_mode<synchronous>, transform_indices = @transform_3, window_bounds = array<i64: 128, 128>}, {transform_indices = @transform_4, window_bounds = array<i64: 16, 128>}]} {
    %c0 = arith.constant 0 : index
    %c0_0 = arith.constant 0 : index
    %0 = vector.load %arg1[%c0, %c0_0] : memref<16x80xbf16, #tpu.memory_space<vmem>>, vector<16x80xbf16>
    %c0_1 = arith.constant 0 : index
    %c0_2 = arith.constant 0 : index
    %1 = vector.load %arg2[%c0_1, %c0_2] : memref<80x128xbf16, #tpu.memory_space<vmem>>, vector<80x128xbf16>
    %cst = arith.constant dense<0.000000e+00> : vector<16x128xf32>
    %2 = tpu.matmul %0, %1, %cst {dimension_numbers = #tpu.dot_dimension_numbers<[1], [0], [0], [1], [0, 0, 1, 1], [], []>} : vector<16x80xbf16>, vector<80x128xbf16>, vector<16x128xf32> -> vector<16x128xf32>
    %c0_3 = arith.constant 0 : index
    %c0_4 = arith.constant 0 : index
    %3 = vector.load %arg3[%c0_3, %c0_4] : memref<1x128xf32, #tpu.memory_space<vmem>>, vector<1x128xf32>
    %4 = vector.broadcast %3 : vector<1x128xf32> to vector<16x128xf32>
    %5 = arith.addf %2, %4 : vector<16x128xf32>
    %6 = arith.mulf %5, %5 : vector<16x128xf32>
    %7 = arith.truncf %6 : vector<16x128xf32> to vector<16x128xbf16>
    %c0_5 = arith.constant 0 : index
    %c0_6 = arith.constant 0 : index
    %8 = vector.load %arg4[%c0_5, %c0_6] : memref<128x128xbf16, #tpu.memory_space<vmem>>, vector<128x128xbf16>
    %cst_7 = arith.constant dense<0.000000e+00> : vector<16x128xf32>
    %9 = tpu.matmul %7, %8, %cst_7 {dimension_numbers = #tpu.dot_dimension_numbers<[1], [0], [0], [1], [0, 0, 1, 1], [], []>} : vector<16x128xbf16>, vector<128x128xbf16>, vector<16x128xf32> -> vector<16x128xf32>
    %cst_8 = arith.constant 1.000000e+00 : f32
    %10 = vector.broadcast %cst_8 : f32 to vector<16x128xf32>
    %11 = arith.addf %10, %9 : vector<16x128xf32>
    %12 = tpu.reciprocal %11 {approx = true} : vector<16x128xf32> -> vector<16x128xf32>
    %13 = math.sqrt %9 : vector<16x128xf32>
    %14 = arith.mulf %5, %13 : vector<16x128xf32>
    %15 = arith.mulf %14, %12 : vector<16x128xf32>
    %16 = arith.truncf %15 : vector<16x128xf32> to vector<16x128xbf16>
    %c0_9 = arith.constant 0 : index
    %c0_10 = arith.constant 0 : index
    %17 = vector.load %arg5[%c0_9, %c0_10] : memref<16x128xbf16, #tpu.memory_space<vmem>>, vector<16x128xbf16>
    tpu.vector_store %arg5[%c0_9, %c0_10], %16 {strides = array<i32>} : memref<16x128xbf16, #tpu.memory_space<vmem>>, vector<16x128xbf16>,
    return
  }
  func.func @transform_0(%arg0: i32) -> (i32, i32) {
    %c0_i32 = arith.constant 0 : i32
    %c0_i32_0 = arith.constant 0 : i32
    return %arg0, %c0_i32 : i32, i32
  }
  func.func @transform_1(%arg0: i32) -> (i32, i32) {
    %c0_i32 = arith.constant 0 : i32
    %c0_i32_0 = arith.constant 0 : i32
    %c0_i32_1 = arith.constant 0 : i32
    return %c0_i32, %c0_i32_0 : i32, i32
  }
  func.func @transform_2(%arg0: i32) -> (i32, i32) {
    %c0_i32 = arith.constant 0 : i32
    %c0_i32_0 = arith.constant 0 : i32
    %c0_i32_1 = arith.constant 0 : i32
    return %c0_i32, %c0_i32_0 : i32, i32
  }
  func.func @transform_3(%arg0: i32) -> (i32, i32) {
    %c0_i32 = arith.constant 0 : i32
    %c0_i32_0 = arith.constant 0 : i32
    %c0_i32_1 = arith.constant 0 : i32
    return %c0_i32, %c0_i32_0 : i32, i32
  }
  func.func @transform_4(%arg0: i32) -> (i32, i32) {
    %c0_i32 = arith.constant 0 : i32
    %c0_i32_0 = arith.constant 0 : i32
    return %arg0, %c0_i32 : i32, i32
  }
}

</mosaic_0001>

<llo_original>
// kernel: tpu_custom_call.1
$region0: #{tpu_custom_call.1}
  #allocation0 [shape = 'u32[]', space=smem, size = 0x4, offset = 0x4, fixed_abs, tag = 'smem constant byte address 0x4 - core index']
  #allocation1 [shape = 'u32[144,128]{1,0:T(1,128)}', space=vmem, size = 0x12000, scoped, tag = 'internal scratch']
  %s0 = inlined_call_operand.hbm [shape: bf16[32,80], index: 0, kind: input, shape index: {}]
  %s1 = inlined_call_operand.hbm [shape: bf16[80,128], index: 1, kind: input, shape index: {}]
  %s2 = inlined_call_operand.vmem [shape: f32[1,128], index: 2, kind: input, shape index: {}]
  %s3 = inlined_call_operand.hbm [shape: bf16[128,128], index: 3, kind: input, shape index: {}]
  %s4 = inlined_call_operand.hbm [shape: bf16[32,128], index: 4, kind: output, shape index: {}]
  %s5 = sld [smem:[#allocation0]]
  $region61: #{tpu_custom_call.1} parent=0
    _
  %s7 = ssub.s32 1, %s5
  %s8 = scalar_select 0, %s7, %s5
  $region1: #{tpu_custom_call.1} parent=0
    #allocation2 [shape = 'u8[8192]{0}', space=vmem, size = 0x2000, scoped, tag = 'input window, operand 0']
    #allocation3 [shape = 's32[2]{0}', space=sflag, size = 0x8, scoped, tag = 'scoped memory for tpu_custom_call.1']
    #allocation4 [shape = 's32[2]{0}', space=sflag, size = 0x8, scoped, tag = 'scoped memory for tpu_custom_call.1']
    #allocation5 [shape = 'u8[20480]{0}', space=vmem, size = 0x5000, scoped, tag = 'input window, operand 1, single buffered']
    #allocation6 [shape = 's32[1]{0}', space=sflag, size = 0x4, scoped, tag = 'scoped memory for tpu_custom_call.1']
    #allocation7 [shape = 'u8[32768]{0}', space=vmem, size = 0x8000, scoped, tag = 'input window, operand 3, single buffered']
    #allocation8 [shape = 'u8[8192]{0}', space=vmem, size = 0x2000, scoped, tag = 'output window, operand 0']
    %9 = vsyncpa [#allocation3], 0
    %s10 = scalar_lea.sflag [#allocation3], 1
    %11 = vsyncpa %s10, 0
    %12 = vsyncpa [#allocation6], 0
    %13 = vsyncpa [#allocation4], 0
    %s14 = scalar_lea.sflag [#allocation4], 1
    %15 = vsyncpa %s14, 0
    loop: start=0, step=1, limit=4
    $region2: #{tpu_custom_call.1} parent=1 // loop_pre_header
      _
    $region3: #{tpu_custom_call.1} parent=1 // loop_header
      %s17 = sphi 0, %s21
      %p18 = scmp.ge.s32.totalorder %s17, 4
      %s27 = sphi 0, %s29
      %s30 = sphi 0, %s27
      %s31 = sphi 0, %s30
      %s47 = sphi 0, %s31
      %s51 = sphi 0, %s51
      %s53 = sphi 0, %s51
      %s54 = sphi 0, %s53
      %s68 = sphi 0, %s54
      %s72 = sphi 0, %s72
      %s74 = sphi 0, %s72
      %s75 = sphi 0, %s74
      %s89 = sphi 0, %s75
      %s93 = sphi 0, %s93
      %s95 = sphi 0, %s93
      %s96 = sphi 0, %s95
      %s110 = sphi 0, %s96
      %s116 = sphi 0, %s118
      %s119 = sphi 0, %s116
      %s120 = sphi 0, %s119
      %s136 = sphi 0, %s120
    $region4: #{tpu_custom_call.1} parent=1 // loop_header_branch
      %20 = sbr.rel (%p18) target = $region8
    $region5: #{tpu_custom_call.1} parent=1 // loop_body
      %s22 = ssub.s32 %s17, 1
      %s23 = ssub.s32 %s17, 2
      %s24 = sadd.s32 %s17, 1
      %s25 = ssub.s32 %s17, %s24
      %p26 = scmp.eq.s32.totalorder %s25, 0
      %s28 = sadd.s32 %s27, 1
      %s29 = scalar_select %p26, %s27, %s28
      %p32 = pneg %p26
      %p33 = scmp.eq.s32.totalorder %s17, 1
      %p34 = por %p32, %p33
      %p35 = scmp.ne.s32.totalorder %s27, %s30
      %p36 = scmp.eq.s32.totalorder %s17, 0
      %p37 = por %p35, %p36
      %p38 = scmp.ne.s32.totalorder %s27, %s30
      %p39 = scmp.eq.s32.totalorder %s22, 1
      %p40 = por %p38, %p39
      %p41 = scmp.ne.s32.totalorder %s30, %s31
      %p42 = scmp.eq.s32.totalorder %s22, 0
      %p43 = por %p41, %p42
      %p44 = scmp.ne.s32.totalorder %s30, %s31
      %p45 = scmp.eq.s32.totalorder %s23, 1
      %p46 = por %p44, %p45
      %p48 = scmp.ne.s32.totalorder %s31, %s47
      %p49 = scmp.eq.s32.totalorder %s23, 0
      %p50 = por %p48, %p49
      %s52 = sadd.s32 %s51, 1
      %p55 = scmp.eq.s32.totalorder %s17, 1
      %p56 = scmp.ne.s32.totalorder %s51, %s53
      %p57 = scmp.eq.s32.totalorder %s17, 0
      %p58 = por %p56, %p57
      %p59 = scmp.ne.s32.totalorder %s51, %s53
      %p60 = scmp.eq.s32.totalorder %s22, 1
      %p61 = por %p59, %p60
      %p62 = scmp.ne.s32.totalorder %s53, %s54
      %p63 = scmp.eq.s32.totalorder %s22, 0
      %p64 = por %p62, %p63
      %p65 = scmp.ne.s32.totalorder %s53, %s54
      %p66 = scmp.eq.s32.totalorder %s23, 1
      %p67 = por %p65, %p66
      %p69 = scmp.ne.s32.totalorder %s54, %s68
      %p70 = scmp.eq.s32.totalorder %s23, 0
      %p71 = por %p69, %p70
      %s73 = sadd.s32 %s72, 1
      %p76 = scmp.eq.s32.totalorder %s17, 1
      %p77 = scmp.ne.s32.totalorder %s72, %s74
      %p78 = scmp.eq.s32.totalorder %s17, 0
      %p79 = por %p77, %p78
      %p80 = scmp.ne.s32.totalorder %s72, %s74
      %p81 = scmp.eq.s32.totalorder %s22, 1
      %p82 = por %p80, %p81
      %p83 = scmp.ne.s32.totalorder %s74, %s75
      %p84 = scmp.eq.s32.totalorder %s22, 0
      %p85 = por %p83, %p84
      %p86 = scmp.ne.s32.totalorder %s74, %s75
      %p87 = scmp.eq.s32.totalorder %s23, 1
      %p88 = por %p86, %p87
      %p90 = scmp.ne.s32.totalorder %s75, %s89
      %p91 = scmp.eq.s32.totalorder %s23, 0
      %p92 = por %p90, %p91
      %s94 = sadd.s32 %s93, 1
      %p97 = scmp.eq.s32.totalorder %s17, 1
      %p98 = scmp.ne.s32.totalorder %s93, %s95
      %p99 = scmp.eq.s32.totalorder %s17, 0
      %p100 = por %p98, %p99
      %p101 = scmp.ne.s32.totalorder %s93, %s95
      %p102 = scmp.eq.s32.totalorder %s22, 1
      %p103 = por %p101, %p102
      %p104 = scmp.ne.s32.totalorder %s95, %s96
      %p105 = scmp.eq.s32.totalorder %s22, 0
      %p106 = por %p104, %p105
      %p107 = scmp.ne.s32.totalorder %s95, %s96
      %p108 = scmp.eq.s32.totalorder %s23, 1
      %p109 = por %p107, %p108
      %p111 = scmp.ne.s32.totalorder %s96, %s110
      %p112 = scmp.eq.s32.totalorder %s23, 0
      %p113 = por %p111, %p112
      %s114 = ssub.s32 %s17, %s24
      %p115 = scmp.eq.s32.totalorder %s114, 0
      %s117 = sadd.s32 %s116, 1
      %s118 = scalar_select %p115, %s116, %s117
      %p121 = pneg %p115
      %p122 = scmp.eq.s32.totalorder %s17, 1
      %p123 = por %p121, %p122
      %p124 = scmp.ne.s32.totalorder %s116, %s119
      %p125 = scmp.eq.s32.totalorder %s17, 0
      %p126 = por %p124, %p125
      %p127 = scmp.ne.s32.totalorder %s116, %s119
      %p128 = scmp.eq.s32.totalorder %s22, 1
      %p129 = por %p127, %p128
      %p130 = scmp.ne.s32.totalorder %s119, %s120
      %p131 = scmp.eq.s32.totalorder %s22, 0
      %p132 = por %p130, %p131
      %p133 = scmp.ne.s32.totalorder %s119, %s120
      %p134 = scmp.eq.s32.totalorder %s23, 1
      %p135 = por %p133, %p134
      %p137 = scmp.ne.s32.totalorder %s120, %s136
      %p138 = scmp.eq.s32.totalorder %s23, 0
      %p139 = por %p137, %p138
      %p140 = scmp.le.s32.totalorder 1, %s17
      %p141 = scmp.lt.s32.totalorder %s17, 3
      %p142 = pnand %p140, %p141
      %p143 = pneg %p142
      // Predicated region
      $region9: #{tpu_custom_call.1} parent=5 // pred_check
        _
      $region10: #{tpu_custom_call.1} parent=5 // pred_check_branch
        %145 = sbr.rel (%p142) target = $region12
      $region11: #{tpu_custom_call.1} parent=5 // pred_region
        %s146 = ssub.s32 %s17, 1
        // Predicated region
        $region13: #{tpu_custom_call.1} parent=11 // pred_check
          %p147 = pneg %p64
        $region14: #{tpu_custom_call.1} parent=11 // pred_check_branch
          %149 = sbr.rel (%p147) target = $region16
        $region15: #{tpu_custom_call.1} parent=11 // pred_region
          %s151 = ssub.s32 640, 640
          %152 = vsyncadd [#allocation6], %s151
          %s153 = sshll.u32 [#allocation5], 4
          %s154 = int_to_ptr.vmem [resolvable:$true] %s153
          %159 = dma.hbm_to_vmem [thread:$0]  %s1, 640, %s154, [#allocation6], 64, 64, 4
        $region16: #{tpu_custom_call.1} parent=11 // pred_fallthru
          _
        // Predicated region
        $region17: #{tpu_custom_call.1} parent=11 // pred_check
          %p160 = pneg %p85
        $region18: #{tpu_custom_call.1} parent=11 // pred_check_branch
          %162 = sbr.rel (%p160) target = $region20
        $region19: #{tpu_custom_call.1} parent=11 // pred_region
          _
        $region20: #{tpu_custom_call.1} parent=11 // pred_fallthru
          _
        // Predicated region
        $region21: #{tpu_custom_call.1} parent=11 // pred_check
          %p163 = pneg %p106
        $region22: #{tpu_custom_call.1} parent=11 // pred_check_branch
          %165 = sbr.rel (%p163) target = $region24
        $region23: #{tpu_custom_call.1} parent=11 // pred_region
          %s167 = ssub.s32 1024, 1024
          %168 = vsyncadd [#allocation6], %s167
          %s169 = sshll.u32 [#allocation7], 4
          %s170 = int_to_ptr.vmem [resolvable:$true] %s169
          %175 = dma.hbm_to_vmem [thread:$0]  %s3, 1024, %s170, [#allocation6], 64, 64, 4
        $region24: #{tpu_custom_call.1} parent=11 // pred_fallthru
          _
      $region12: #{tpu_custom_call.1} parent=5 // pred_fallthru
        _
      %p176 = scmp.lt.s32.totalorder %s17, 2
      // Predicated region
      $region25: #{tpu_custom_call.1} parent=5 // pred_check
        %p177 = pneg %p176
      $region26: #{tpu_custom_call.1} parent=5 // pred_check_branch
        %179 = sbr.rel (%p177) target = $region28
      $region27: #{tpu_custom_call.1} parent=5 // pred_region
        // Predicated region
        $region29: #{tpu_custom_call.1} parent=27 // pred_check
          %p180 = pneg %p37
        $region30: #{tpu_custom_call.1} parent=27 // pred_check_branch
          %182 = sbr.rel (%p180) target = $region32
        $region31: #{tpu_custom_call.1} parent=27 // pred_region
          %s183 = sand.u32 %s27, 1
          %s184 = scalar_lea.sflag [#allocation3], %s183
          %s185 = sand.u32 %s27, 1
          %s186 = smul.addr %s185, 8
          %s187 = scalar_lea.vmem [#allocation2], %s186
          %s188 = smul.u32 2, %s17
          %s190 = ssub.s32 128, 128
          %191 = vsyncadd %s184, %s190
          %s192 = smul.addr %s188, 64
          %s193 = scalar_lea.hbm %s0, %s192
          %s194 = sshll.u32 %s187, 4
          %s195 = int_to_ptr.vmem [resolvable:$true] %s194
          %200 = dma.hbm_to_vmem [thread:$0]  %s193, 128, %s195, %s184, 64, 64, 4
        $region32: #{tpu_custom_call.1} parent=27 // pred_fallthru
          _
      $region28: #{tpu_custom_call.1} parent=5 // pred_fallthru
        _
      %p201 = scmp.le.s32.totalorder 1, %s17
      %p202 = scmp.lt.s32.totalorder %s17, 3
      %p203 = pnand %p201, %p202
      %p204 = pneg %p203
      // Predicated region
      $region33: #{tpu_custom_call.1} parent=5 // pred_check
        _
      $region34: #{tpu_custom_call.1} parent=5 // pred_check_branch
        %206 = sbr.rel (%p203) target = $region36
      $region35: #{tpu_custom_call.1} parent=5 // pred_region
        %s207 = ssub.s32 %s17, 1
        %s208 = sand.u32 %s30, 1
        %s209 = scalar_lea.sflag [#allocation3], %s208
        %s210 = sand.u32 %s30, 1
        %s211 = smul.addr %s210, 8
        %s212 = scalar_lea.vmem [#allocation2], %s211
        // Predicated region
        $region37: #{tpu_custom_call.1} parent=35 // pred_check
          %p213 = pneg %p43
        $region38: #{tpu_custom_call.1} parent=35 // pred_check_branch
          %215 = sbr.rel (%p213) target = $region40
        $region39: #{tpu_custom_call.1} parent=35 // pred_region
          %216 = dma.done %s209, 128
        $region40: #{tpu_custom_call.1} parent=35 // pred_fallthru
          _
        // Predicated region
        $region41: #{tpu_custom_call.1} parent=35 // pred_check
          %p217 = pneg %p64
        $region42: #{tpu_custom_call.1} parent=35 // pred_check_branch
          %219 = sbr.rel (%p217) target = $region44
        $region43: #{tpu_custom_call.1} parent=35 // pred_region
          %220 = dma.done [#allocation6], 640
        $region44: #{tpu_custom_call.1} parent=35 // pred_fallthru
          _
        // Predicated region
        $region45: #{tpu_custom_call.1} parent=35 // pred_check
          %p221 = pneg %p106
        $region46: #{tpu_custom_call.1} parent=35 // pred_check_branch
          %223 = sbr.rel (%p221) target = $region48
        $region47: #{tpu_custom_call.1} parent=35 // pred_region
          %224 = dma.done [#allocation6], 1024
        $region48: #{tpu_custom_call.1} parent=35 // pred_fallthru
          _
        %s225 = sand.u32 %s30, 1
        %s226 = scalar_lea.sflag [#allocation3], %s225
        %s227 = sand.u32 %s30, 1
        %s228 = smul.addr %s227, 8
        %s229 = scalar_lea.vmem [#allocation2], %s228
        %p230 = pneg %p43
        %p231 = pneg %p40
        %p232 = pneg %p64
        %p233 = pneg %p61
        %p234 = pneg %p85
        %p235 = pneg %p82
        %p236 = pneg %p106
        %p237 = pneg %p103
        %p238 = pneg %p132
        %p239 = pneg %p129
        %s240 = sand.u32 %s119, 1
        %s241 = scalar_lea.sflag [#allocation4], %s240
        %s242 = sand.u32 %s119, 1
        %s243 = smul.addr %s242, 8
        %s244 = scalar_lea.vmem [#allocation8], %s243
        %s245 = smul.u32 2, %s22
        %s246 = smul.u32 2, %s22
        %v248 = vld [vmem:[%s212] sm:$0xf]
        %v249 = vld [vmem:[%s212 + $0x4] sm:$0xf]
        %v250 = vld [vmem:[#allocation5] sm:$0xf]
        %v251 = vld [vmem:[#allocation5 + $0x4] sm:$0xf]
        %v252 = vld [vmem:[#allocation5 + $0x8] sm:$0xf]
        %v253 = vld [vmem:[#allocation5 + $0xc] sm:$0xf]
        %v254 = vld [vmem:[#allocation5 + $0x10] sm:$0xf]
        %v255 = vld [vmem:[#allocation5 + $0x14] sm:$0xf]
        %v256 = vld [vmem:[#allocation5 + $0x18] sm:$0xf]
        %v257 = vld [vmem:[#allocation5 + $0x1c] sm:$0xf]
        %v258 = vld [vmem:[#allocation5 + $0x20] sm:$0xf]
        %v259 = vld [vmem:[#allocation5 + $0x24] sm:$0xf]
        %v260 = vld [vmem:[%s2] sm:$0x1]
        %v262 = vlaneseq
        %v263 = vshrl.u32 %v262, 7
        %v264 = vsub.s32 0, %v263
        %v265 = vrot.slane %v260, %v264
        %v269 = vunpack.c.l.b16 %v248
        %v270 = vunpack.c.l.b16 %v249
        %v271 = vpack.c.b16 %v270, %v269
        %v282 = vunpack.c.l.b16 %v250
        %v283 = vunpack.c.l.b16 %v251
        %v284 = vunpack.c.l.b16 %v252
        %v285 = vunpack.c.l.b16 %v253
        %v286 = vunpack.c.l.b16 %v254
        %v287 = vunpack.c.l.b16 %v255
        %v288 = vunpack.c.l.b16 %v256
        %v289 = vunpack.c.l.b16 %v257
        %v290 = vunpack.c.l.b16 %v258
        %v291 = vunpack.c.l.b16 %v259
        %v292 = vpack.c.b16 %v283, %v282
        %v293 = vpack.c.b16 %v285, %v284
        %v294 = vpack.c.b16 %v287, %v286
        %v295 = vpack.c.b16 %v289, %v288
        %v296 = vpack.c.b16 %v291, %v290
        %vm302 = vcmask 654336
        %v304 = vsel %vm302, %v271, 0
        %306 = vmatprep.subr.bf16.mxu0 0
        %307 = vmatpush1.bf16.msra.mxu0 0
        %308 = vmatprep.subr.bf16.mxu0 0
        %309 = vmatpush1.bf16.msra.mxu0 0
        %310 = vmatprep.subr.bf16.mxu0 0
        %311 = vmatpush1.bf16.msra.mxu0 0
        %312 = vmatprep.subr.bf16.mxu0 0
        %313 = vmatpush1.bf16.msra.mxu0 %v296
        %314 = vmatprep.subr.bf16.mxu0 0
        %315 = vmatpush1.bf16.msra.mxu0 %v295
        %316 = vmatprep.subr.bf16.mxu0 0
        %317 = vmatpush1.bf16.msra.mxu0 %v294
        %318 = vmatprep.subr.bf16.mxu0 0
        %319 = vmatpush1.bf16.msra.mxu0 %v293
        %320 = vmatprep.subr.bf16.mxu0 0
        %321 = vmatpush1.bf16.msra.mxu0 %v292
        %322 = vmatprep.subr.bf16.mxu0 0
        %323 = vmatpush2.bf16.msra.mxu0 0
        %324 = vmatprep.subr.bf16.mxu0 0
        %325 = vmatpush2.bf16.msra.mxu0 0
        %326 = vmatprep.subr.bf16.mxu0 0
        %327 = vmatpush2.bf16.msra.mxu0 0
        %328 = vmatprep.subr.bf16.mxu0 0
        %329 = vmatpush2.bf16.msra.mxu0 0
        %330 = vmatprep.subr.bf16.mxu0 0
        %331 = vmatpush2.bf16.msra.mxu0 0
        %332 = vmatprep.subr.bf16.mxu0 0
        %333 = vmatpush2.bf16.msra.mxu0 0
        %334 = vmatprep.subr.bf16.mxu0 0
        %335 = vmatpush2.bf16.msra.mxu0 0
        %336 = vmatprep.subr.bf16.mxu0 0
        %337 = vmatpush2.bf16.msra.mxu0 0
        %338 = vmatprep.mubr.bf16.mxu0 0
        %339 = vmatmul.mubr.bf16.gmra.mxu0 %v304
        %v340 = vpop.f32.mrf.mxu0
        %v341 = vadd.f32 %v265, %v340
        %v342 = vpop.f32.mrf.mxu0
        %v343 = vpop.f32.mrf.mxu0
        %v344 = vadd.f32 %v265, %v343
        %v345 = vpop.f32.mrf.mxu0
        %346 = vdwg.mxu0
        %v347 = vmul.f32 %v341, %v341
        %v348 = vmul.f32 %v344, %v344
        %v349 = vpack.c.bf16 %v348, %v347
        %v350 = vld [vmem:[#allocation7] sm:$0xf]
        %v351 = vld [vmem:[#allocation7 + $0x4] sm:$0xf]
        %v352 = vld [vmem:[#allocation7 + $0x8] sm:$0xf]
        %v353 = vld [vmem:[#allocation7 + $0xc] sm:$0xf]
        %v354 = vld [vmem:[#allocation7 + $0x10] sm:$0xf]
        %v355 = vld [vmem:[#allocation7 + $0x14] sm:$0xf]
        %v356 = vld [vmem:[#allocation7 + $0x18] sm:$0xf]
        %v357 = vld [vmem:[#allocation7 + $0x1c] sm:$0xf]
        %v358 = vld [vmem:[#allocation7 + $0x20] sm:$0xf]
        %v359 = vld [vmem:[#allocation7 + $0x24] sm:$0xf]
        %v360 = vld [vmem:[#allocation7 + $0x28] sm:$0xf]
        %v361 = vld [vmem:[#allocation7 + $0x2c] sm:$0xf]
        %v362 = vld [vmem:[#allocation7 + $0x30] sm:$0xf]
        %v363 = vld [vmem:[#allocation7 + $0x34] sm:$0xf]
        %v364 = vld [vmem:[#allocation7 + $0x38] sm:$0xf]
        %v365 = vld [vmem:[#allocation7 + $0x3c] sm:$0xf]
        %v382 = vunpack.c.l.b16 %v350
        %v383 = vunpack.c.l.b16 %v351
        %v384 = vunpack.c.l.b16 %v352
        %v385 = vunpack.c.l.b16 %v353
        %v386 = vunpack.c.l.b16 %v354
        %v387 = vunpack.c.l.b16 %v355
        %v388 = vunpack.c.l.b16 %v356
        %v389 = vunpack.c.l.b16 %v357
        %v390 = vunpack.c.l.b16 %v358
        %v391 = vunpack.c.l.b16 %v359
        %v392 = vunpack.c.l.b16 %v360
        %v393 = vunpack.c.l.b16 %v361
        %v394 = vunpack.c.l.b16 %v362
        %v395 = vunpack.c.l.b16 %v363
        %v396 = vunpack.c.l.b16 %v364
        %v397 = vunpack.c.l.b16 %v365
        %v398 = vpack.c.b16 %v383, %v382
        %v399 = vpack.c.b16 %v385, %v384
        %v400 = vpack.c.b16 %v387, %v386
        %v401 = vpack.c.b16 %v389, %v388
        %v402 = vpack.c.b16 %v391, %v390
        %v403 = vpack.c.b16 %v393, %v392
        %v404 = vpack.c.b16 %v395, %v394
        %v405 = vpack.c.b16 %v397, %v396
        %414 = vmatprep.subr.bf16.mxu0 0
        %415 = vmatpush1.bf16.msra.mxu0 %v405
        %416 = vmatprep.subr.bf16.mxu0 0
        %417 = vmatpush1.bf16.msra.mxu0 %v404
        %418 = vmatprep.subr.bf16.mxu0 0
        %419 = vmatpush1.bf16.msra.mxu0 %v403
        %420 = vmatprep.subr.bf16.mxu0 0
        %421 = vmatpush1.bf16.msra.mxu0 %v402
        %422 = vmatprep.subr.bf16.mxu0 0
        %423 = vmatpush1.bf16.msra.mxu0 %v401
        %424 = vmatprep.subr.bf16.mxu0 0
        %425 = vmatpush1.bf16.msra.mxu0 %v400
        %426 = vmatprep.subr.bf16.mxu0 0
        %427 = vmatpush1.bf16.msra.mxu0 %v399
        %428 = vmatprep.subr.bf16.mxu0 0
        %429 = vmatpush1.bf16.msra.mxu0 %v398
        %430 = vmatprep.subr.bf16.mxu0 0
        %431 = vmatpush2.bf16.msra.mxu0 0
        %432 = vmatprep.subr.bf16.mxu0 0
        %433 = vmatpush2.bf16.msra.mxu0 0
        %434 = vmatprep.subr.bf16.mxu0 0
        %435 = vmatpush2.bf16.msra.mxu0 0
        %436 = vmatprep.subr.bf16.mxu0 0
        %437 = vmatpush2.bf16.msra.mxu0 0
        %438 = vmatprep.subr.bf16.mxu0 0
        %439 = vmatpush2.bf16.msra.mxu0 0
        %440 = vmatprep.subr.bf16.mxu0 0
        %441 = vmatpush2.bf16.msra.mxu0 0
        %442 = vmatprep.subr.bf16.mxu0 0
        %443 = vmatpush2.bf16.msra.mxu0 0
        %444 = vmatprep.subr.bf16.mxu0 0
        %445 = vmatpush2.bf16.msra.mxu0 0
        %446 = vmatprep.mubr.bf16.mxu0 0
        %447 = vmatmul.mubr.bf16.gmra.mxu0 %v349
        %v448 = vpop.f32.mrf.mxu0
        %v449 = vadd.f32 0.0, %v448
        %v450 = vpop.f32.mrf.mxu0
        %v451 = vpop.f32.mrf.mxu0
        %v452 = vadd.f32 0.0, %v451
        %v453 = vpop.f32.mrf.mxu0
        %454 = vdwg.mxu0
        %v455 = vadd.f32 %v449, 1.0
        %v456 = vadd.f32 %v452, 1.0
        %v457 = vrcp.pop %v455
        %v458 = vrcp.pop %v456
        %v459 = vrsqrt.pop %v449
        %v460 = vmul.f32 %v449, %v459
        %vm461 = vcmp.eq.f32.partialorder %v449, inf
        %v462 = vsel %vm461, %v449, %v460
        %vm463 = vcmp.eq.f32.partialorder %v449, 0.0
        %v464 = vand.u32 %v449, 2147483648
        %v465 = vsel %vm463, %v464, %v462
        %v466 = vrsqrt.pop %v452
        %v467 = vmul.f32 %v452, %v466
        %vm468 = vcmp.eq.f32.partialorder %v452, inf
        %v469 = vsel %vm468, %v452, %v467
        %vm470 = vcmp.eq.f32.partialorder %v452, 0.0
        %v471 = vand.u32 %v452, 2147483648
        %v472 = vsel %vm470, %v471, %v469
        %v473 = vmul.f32 %v341, %v465
        %v474 = vmul.f32 %v344, %v472
        %v475 = vmul.f32 %v473, %v457
        %v476 = vmul.f32 %v474, %v458
        %v477 = vpack.c.bf16 %v476, %v475
        %v479 = vunpack.c.l.b16 %v477
        %v480 = vunpack.c.h.b16 %v477
        %v481 = vpack.c.b16 %v479, %v479
        %v482 = vpack.c.b16 %v480, %v480
        %485 = vst [vmem:[%s244] sm:$0xf] %v481
        %486 = vst [vmem:[%s244 + $0x4] sm:$0xf] %v482
        %s487 = sand.u32 %s119, 1
        %s488 = scalar_lea.sflag [#allocation4], %s487
        %s489 = sand.u32 %s119, 1
        %s490 = smul.addr %s489, 8
        %s491 = scalar_lea.vmem [#allocation8], %s490
        // Predicated region
        $region49: #{tpu_custom_call.1} parent=35 // pred_check
          %p492 = pneg %p129
        $region50: #{tpu_custom_call.1} parent=35 // pred_check_branch
          %494 = sbr.rel (%p492) target = $region52
        $region51: #{tpu_custom_call.1} parent=35 // pred_region
          %s495 = smul.u32 2, %s22
          %s497 = ssub.s32 128, 128
          %498 = vsyncadd %s488, %s497
          %s499 = smul.addr %s495, 64
          %s500 = scalar_lea.hbm %s4, %s499
          %s501 = sshll.u32 %s491, 4
          %s502 = int_to_ptr.vmem [resolvable:$true] %s501
          %507 = dma.vmem_to_hbm [thread:$0]  %s502, 128, %s500, %s488, 64, 64, 4
        $region52: #{tpu_custom_call.1} parent=35 // pred_fallthru
          _
      $region36: #{tpu_custom_call.1} parent=5 // pred_fallthru
        _
      %p508 = scmp.le.s32.totalorder 2, %s17
      // Predicated region
      $region53: #{tpu_custom_call.1} parent=5 // pred_check
        %p509 = pneg %p508
      $region54: #{tpu_custom_call.1} parent=5 // pred_check_branch
        %511 = sbr.rel (%p509) target = $region56
      $region55: #{tpu_custom_call.1} parent=5 // pred_region
        %s512 = ssub.s32 %s17, 2
        // Predicated region
        $region57: #{tpu_custom_call.1} parent=55 // pred_check
          %p513 = pneg %p135
        $region58: #{tpu_custom_call.1} parent=55 // pred_check_branch
          %515 = sbr.rel (%p513) target = $region60
        $region59: #{tpu_custom_call.1} parent=55 // pred_region
          %s516 = sand.u32 %s120, 1
          %s517 = scalar_lea.sflag [#allocation4], %s516
          %s518 = sand.u32 %s120, 1
          %s519 = smul.addr %s518, 8
          %s520 = scalar_lea.vmem [#allocation8], %s519
          %521 = dma.done %s517, 128
        $region60: #{tpu_custom_call.1} parent=55 // pred_fallthru
          _
      $region56: #{tpu_custom_call.1} parent=5 // pred_fallthru
        _
    $region6: #{tpu_custom_call.1} parent=1 // loop_footer
      %s21 = sadd.s32 1, %s17
    $region7: #{tpu_custom_call.1} parent=1 // loop_footer_branch
      %16 = sbr.rel target = $region3
    $region8: #{tpu_custom_call.1} parent=1 // loop_exit
      _
    %522 = vsyncpa [#allocation3], 1
    %s523 = scalar_lea.sflag [#allocation3], 1
    %524 = vsyncpa %s523, 1
    %525 = vsyncpa [#allocation6], 1
    %526 = vsyncpa [#allocation4], 1
    %s527 = scalar_lea.sflag [#allocation4], 1
    %528 = vsyncpa %s527, 1

</llo_original>
